<compile_context>
chip_gen: v7x
topology: tpu7x:2x2x1
jax: 0.10.0
libtpu: 0.0.40
codegen_flags: <defaults>
</compile_context>

<pallas_src>
import functools

import jax
import jax.numpy as jnp
from jax.experimental import pallas as pl
from jax.experimental.pallas import tpu as pltpu

EPS = 1e-6  # LayerNormalization eps


def _i32(x: int) -> int:
    """Python int -> two's-complement int32 value (for hash constants)."""
    x &= 0xFFFFFFFF
    return x - (1 << 32) if x >= (1 << 31) else x


_HASH_C1 = _i32(0x9E3779B9)
_HASH_C2 = _i32(0x85EBCA6B)
_HASH_C3 = _i32(0xC2B2AE35)


def _tile_rows(n: int, d: int, itemsize: int, n_operands: int,
               target: int = 512, vmem_budget: int = 24 * 1024 * 1024) -> int:
    """Rows per tile.

    Double-buffered tiles of all pipelined operands must stay under ~24 MiB so
    the default scoped-VMEM limit (32 MiB, also on v7x) is never exceeded,
    while larger tiles amortize the ~0.35us per-grid-step overhead.
    """
    per_row = n_operands * 2 * d * itemsize
    t = max(8, min(target, vmem_budget // max(per_row, 1)))
    t = min(t, n)
    if t < n:
        t = max(8, (t // 8) * 8)  # keep the sublane dim a multiple of 8
    return int(t)


# ----------------------------------------------------------------------------
# Kernel 1: LayerNormalization
#   gamma * (x - mean) / (std + eps) + beta
#   NOTE: torch.Tensor.std uses the *unbiased* estimator (N-1 denominator)
#   and eps is added to std (not to the variance), matching the module.
# ----------------------------------------------------------------------------
def _layernorm_kernel(gamma_ref, beta_ref, x_ref, o_ref):
    x = x_ref[...].astype(jnp.float32)          # statistics in f32
    d = x.shape[-1]
    mean = jnp.mean(x, axis=-1, keepdims=True)
    xc = x - mean
    var_unbiased = jnp.sum(xc * xc, axis=-1, keepdims=True) * (1.0 / (d - 1))
    inv_std = 1.0 / (jnp.sqrt(var_unbiased) + EPS)   # per-row (TILE, 1) only
    gamma = gamma_ref[0]
    beta = beta_ref[0]
    # combine scalar gamma with the per-row scale first -> single vmul per elem
    o_ref[...] = (xc * (gamma * inv_std) + beta).astype(o_ref.dtype)


def layer_norm_pallas(x2d, gamma, beta):
    n, d = x2d.shape
    tile = _tile_rows(n, d, x2d.dtype.itemsize, n_operands=2)
    return pl.pallas_call(
        _layernorm_kernel,
        out_shape=jax.ShapeDtypeStruct((n, d), x2d.dtype),
        grid=(pl.cdiv(n, tile),),
        in_specs=[
            pl.BlockSpec(memory_space=pltpu.MemorySpace.SMEM),  # gamma (1,)
            pl.BlockSpec(memory_space=pltpu.MemorySpace.SMEM),  # beta  (1,)
            pl.BlockSpec((tile, d), lambda i: (i, 0)),
        ],
        out_specs=pl.BlockSpec((tile, d), lambda i: (i, 0)),
        compiler_params=pltpu.CompilerParams(
            dimension_semantics=("parallel",)),
    )(gamma, beta, x2d)


# ----------------------------------------------------------------------------
# Kernel 2: residual add + dropout
#   out = x + dropout(y)   (training: keep w.p. 1-p, scale kept by 1/(1-p))
# ----------------------------------------------------------------------------
def _residual_dropout_kernel(seed_ref, x_ref, y_ref, o_ref, *, rate, tile_rows):
    x = x_ref[...]
    y = y_ref[...]                    # stay in the activation dtype
    if rate > 0.0:
        keep_prob = 1.0 - rate
        d = y.shape[-1]
        # Counter-based hash PRNG: portable vector int32 ops only (no
        # TPU-only pltpu.prng_*).  Global element index folds program_id in,
        # so every grid tile gets an independent, deterministic mask.
        row0 = pl.program_id(0) * tile_rows
        rows = jax.lax.broadcasted_iota(jnp.int32, y.shape, 0) + row0
        cols = jax.lax.broadcasted_iota(jnp.int32, y.shape, 1)
        idx = rows * jnp.int32(d) + cols
        seed = seed_ref[0]
        h = idx * jnp.int32(_HASH_C1) + seed * jnp.int32(_HASH_C2)
        h = h ^ (h >> 16)
        h = h * jnp.int32(_HASH_C2)
        h = h ^ (h >> 13)
        h = h * jnp.int32(_HASH_C3)
        h = h ^ (h >> 16)
        u31 = h & jnp.int32(0x7FFFFFFF)                  # uniform in [0, 2^31)
        thr = min(int(round(keep_prob * (1 << 31))), (1 << 31) - 1)
        keep = u31 < jnp.int32(thr)                       # integer threshold
        y = jnp.where(keep, y * jnp.asarray(1.0 / keep_prob, y.dtype),
                      jnp.zeros((), y.dtype))
    o_ref[...] = (x + y).astype(o_ref.dtype)


def residual_dropout_add_pallas(x2d, y2d, seed, rate):
    n, d = x2d.shape
    tile = _tile_rows(n, d, x2d.dtype.itemsize, n_operands=3)
    kernel = functools.partial(_residual_dropout_kernel, rate=float(rate),
                               tile_rows=tile)
    return pl.pallas_call(
        kernel,
        out_shape=jax.ShapeDtypeStruct((n, d), x2d.dtype),
        grid=(pl.cdiv(n, tile),),
        in_specs=[
            pl.BlockSpec(memory_space=pltpu.MemorySpace.SMEM),  # seed (1,)
            pl.BlockSpec((tile, d), lambda i: (i, 0)),
            pl.BlockSpec((tile, d), lambda i: (i, 0)),
        ],
        out_specs=pl.BlockSpec((tile, d), lambda i: (i, 0)),
        compiler_params=pltpu.CompilerParams(
            dimension_semantics=("parallel",)),
    )(seed, x2d, y2d)


# ----------------------------------------------------------------------------
# Module wrapper
# ----------------------------------------------------------------------------
class ResidualConnection:
    """JAX/Pallas port of the PyTorch ResidualConnection module."""

    def __init__(self, dropout: float):
        self.dropout = float(dropout)
        # LayerNormalization params (scalar gamma=1, beta=0 as in the module).
        self.gamma = jnp.ones((1,), jnp.float32)
        self.beta = jnp.zeros((1,), jnp.float32)

    def __call__(self, x, sublayer, *, seed: int = 0, training: bool = True):
        b, s, d = x.shape
        x2d = x.reshape(b * s, d)
        normed = layer_norm_pallas(x2d, self.gamma, self.beta).reshape(b, s, d)
        y = sublayer(normed)  # arbitrary user-supplied sublayer stays in JAX
        rate = self.dropout if training else 0.0
        out = residual_dropout_add_pallas(
            x2d, y.reshape(b * s, d).astype(x2d.dtype),
            jnp.asarray([seed], jnp.int32), rate)
        return out.reshape(b, s, d)


# Pure-JAX references used for sanity checks.
def _reference_layernorm(x, gamma, beta):
    mean = jnp.mean(x, axis=-1, keepdims=True)
    std = jnp.std(x, axis=-1, keepdims=True, ddof=1)  # unbiased, like torch.std
    return gamma * (x - mean) / (std + EPS) + beta


def _reference_no_dropout(x, sublayer, gamma, beta):
    return x + sublayer(_reference_layernorm(x, gamma, beta))


if __name__ == "__main__":
    # NOTE: production d_model should be a multiple of 128 for lane-dense
    # (unmasked) vector stores; the demo d_model=32 exercises the masked path.
    batch, seq, d_model = 2, 8, 32
    key = jax.random.PRNGKey(0)
    kx, kw, kb = jax.random.split(key, 3)

    x = jax.random.normal(kx, (batch, seq, d_model), jnp.float32)

    # Deterministic example sublayer: a linear projection d_model -> d_model.
    w = jax.random.normal(kw, (d_model, d_model), jnp.float32) * 0.05
    b = jax.random.normal(kb, (d_model,), jnp.float32) * 0.05
    sublayer = lambda t: jnp.einsum("bsd,de->bse", t, w) + b

    module = ResidualConnection(dropout=0.1)

    # Eval-mode pass (dropout disabled) -> check against pure-JAX reference.
    out_eval = module(x, sublayer, training=False)
    jax.block_until_ready(out_eval)
    ref_eval = _reference_no_dropout(x, sublayer, 1.0, 0.0)
    assert jnp.allclose(out_eval, ref_eval, atol=1e-4, rtol=1e-4), \
        "eval-mode mismatch vs reference"

    # Training-mode pass (dropout active, deterministic in-kernel hash PRNG).
    out_train = module(x, sublayer, seed=1234, training=True)
    jax.block_until_ready(out_train)

    # Every element must be either the pure residual (dropped) or
    # x + y / keep_prob (kept), and some elements must actually drop.
    keep_prob = 1.0 - module.dropout
    y_ref = sublayer(_reference_layernorm(x, 1.0, 0.0))
    cand_drop = x
    cand_keep = x + y_ref / keep_prob
    dist = jnp.minimum(jnp.abs(out_train - cand_drop),
                       jnp.abs(out_train - cand_keep))
    assert float(jnp.max(dist)) < 1e-3, \
        "train-mode output inconsistent with dropout semantics"
    kept_frac = float(jnp.mean(
        (jnp.abs(out_train - cand_keep) <= jnp.abs(out_train - cand_drop))
        .astype(jnp.float32)))
    assert 0.5 <= kept_frac <= 0.999, f"suspicious keep fraction {kept_frac}"

    print("KERNEL_OK")
</pallas_src>

<mosaic_0001>
module attributes {stable_mosaic.version = 11 : i64} {
  func.func @_layernorm_kernel(%arg0: i32, %arg1: memref<1xf32, #tpu.memory_space<smem>>, %arg2: memref<1xf32, #tpu.memory_space<smem>>, %arg3: memref<16x32xf32, #tpu.memory_space<vmem>>, %arg4: memref<16x32xf32, #tpu.memory_space<vmem>>) attributes {dimension_semantics = [#tpu.dimension_semantics<parallel>], iteration_bounds = array<i64: 1>, scalar_prefetch = 0 : i64, scratch_operands = 0 : i64, tpu.core_type = #tpu.core_type<tc>, window_params = [{transform_indices = @transform_0, window_bounds = array<i64: 1>}, {transform_indices = @transform_1, window_bounds = array<i64: 1>}, {transform_indices = @transform_2, window_bounds = array<i64: 16, 32>}, {transform_indices = @transform_3, window_bounds = array<i64: 16, 32>}]} {
    %c0 = arith.constant 0 : index
    %c0_0 = arith.constant 0 : index
    %0 = vector.load %arg3[%c0, %c0_0] : memref<16x32xf32, #tpu.memory_space<vmem>>, vector<16x32xf32>
    %cst = arith.constant dense<0.000000e+00> : vector<16xf32>
    %1 = vector.multi_reduction <add>, %0, %cst [1] : vector<16x32xf32> to vector<16xf32>
    %2 = vector.shape_cast %1 : vector<16xf32> to vector<16x1xf32>
    %cst_1 = arith.constant 3.200000e+01 : f32
    %3 = vector.broadcast %cst_1 : f32 to vector<16x1xf32>
    %4 = arith.divf %2, %3 : vector<16x1xf32>
    %5 = vector.broadcast %4 : vector<16x1xf32> to vector<16x32xf32>
    %6 = arith.subf %0, %5 : vector<16x32xf32>
    %7 = arith.mulf %6, %6 : vector<16x32xf32>
    %cst_2 = arith.constant dense<0.000000e+00> : vector<16xf32>
    %8 = vector.multi_reduction <add>, %7, %cst_2 [1] : vector<16x32xf32> to vector<16xf32>
    %9 = vector.shape_cast %8 : vector<16xf32> to vector<16x1xf32>
    %cst_3 = arith.constant 0.0322580636 : f32
    %10 = vector.broadcast %cst_3 : f32 to vector<16x1xf32>
    %11 = arith.mulf %9, %10 : vector<16x1xf32>
    %12 = math.sqrt %11 : vector<16x1xf32>
    %cst_4 = arith.constant 9.99999997E-7 : f32
    %13 = vector.broadcast %cst_4 : f32 to vector<16x1xf32>
    %14 = arith.addf %12, %13 : vector<16x1xf32>
    %cst_5 = arith.constant 1.000000e+00 : f32
    %15 = vector.broadcast %cst_5 : f32 to vector<16x1xf32>
    %16 = arith.divf %15, %14 : vector<16x1xf32>
    %c0_6 = arith.constant 0 : index
    %17 = memref.load %arg1[%c0_6] : memref<1xf32, #tpu.memory_space<smem>>
    %c0_7 = arith.constant 0 : index
    %18 = memref.load %arg2[%c0_7] : memref<1xf32, #tpu.memory_space<smem>>
    %19 = vector.broadcast %17 : f32 to vector<16x1xf32>
    %20 = arith.mulf %19, %16 : vector<16x1xf32>
    %21 = vector.broadcast %20 : vector<16x1xf32> to vector<16x32xf32>
    %22 = arith.mulf %6, %21 : vector<16x32xf32>
    %23 = vector.broadcast %18 : f32 to vector<16x32xf32>
    %24 = arith.addf %22, %23 : vector<16x32xf32>
    %c0_8 = arith.constant 0 : index
    %c0_9 = arith.constant 0 : index
    %25 = vector.load %arg4[%c0_8, %c0_9] : memref<16x32xf32, #tpu.memory_space<vmem>>, vector<16x32xf32>
    tpu.vector_store %arg4[%c0_8, %c0_9], %24 {strides = array<i32>} : memref<16x32xf32, #tpu.memory_space<vmem>>, vector<16x32xf32>,
    return
  }
  func.func @transform_0(%arg0: i32) -> i32 {
    %c0_i32 = arith.constant 0 : i32
    %c0_i32_0 = arith.constant 0 : i32
    return %c0_i32 : i32
  }
  func.func @transform_1(%arg0: i32) -> i32 {
    %c0_i32 = arith.constant 0 : i32
    %c0_i32_0 = arith.constant 0 : i32
    return %c0_i32 : i32
  }
  func.func @transform_2(%arg0: i32) -> (i32, i32) {
    %c0_i32 = arith.constant 0 : i32
    %c0_i32_0 = arith.constant 0 : i32
    return %arg0, %c0_i32 : i32, i32
  }
  func.func @transform_3(%arg0: i32) -> (i32, i32) {
    %c0_i32 = arith.constant 0 : i32
    %c0_i32_0 = arith.constant 0 : i32
    return %arg0, %c0_i32 : i32, i32
  }
}

</mosaic_0001>

<llo_original>
// kernel: tpu_custom_call.1
$region0: #{tpu_custom_call.1}
  #allocation0 [shape = 'u32[]', space=smem, size = 0x4, offset = 0x4, fixed_abs, tag = 'smem constant byte address 0x4 - core index']
  #allocation1 [shape = 'u32[144,128]{1,0:T(1,128)}', space=vmem, size = 0x12000, scoped, tag = 'internal scratch']
  #allocation2 [shape = 'f32[1]{0:T(128)S(6)}', space=smem, size = 0x200, scoped, tag = 'scoped memory for tpu_custom_call.1']
  #allocation3 [shape = 'f32[1]{0:T(128)S(6)}', space=smem, size = 0x200, scoped, tag = 'scoped memory for tpu_custom_call.1']
  %s0 = inlined_call_operand.<no memory space> [shape: f32[1], index: 0, kind: input, shape index: {}]
  %s1 = inlined_call_operand.<no memory space> [shape: f32[1], index: 1, kind: input, shape index: {}]
  %s2 = inlined_call_operand.hbm [shape: f32[16,32], index: 2, kind: input, shape index: {}]
  %s3 = inlined_call_operand.hbm [shape: f32[16,32], index: 3, kind: output, shape index: {}]
  %s4 = sld [smem:[#allocation0]]
  $region26: #{tpu_custom_call.1} parent=0
    _
  %s6 = ssub.s32 1, %s4
  %s7 = scalar_select 0, %s6, %s4
  %8 = sst [smem:[#allocation2]] %s0
  %9 = sst [smem:[#allocation3]] %s1
  $region1: #{tpu_custom_call.1} parent=0
    #allocation4 [shape = 'u8[8192]{0}', space=vmem, size = 0x2000, scoped, tag = 'input window, operand 2, single buffered']
    #allocation5 [shape = 's32[1]{0}', space=sflag, size = 0x4, scoped, tag = 'scoped memory for tpu_custom_call.1']
    #allocation6 [shape = 's32[1]{0}', space=sflag, size = 0x4, scoped, tag = 'scoped memory for tpu_custom_call.1']
    #allocation7 [shape = 'u8[8192]{0}', space=vmem, size = 0x2000, scoped, tag = 'output window, operand 0, single buffered']
    %10 = vsyncpa [#allocation5], 0
    %11 = vsyncpa [#allocation6], 0
    // Predicated region
    $region2: #{tpu_custom_call.1} parent=1 // pred_check
      _
    $region3: #{tpu_custom_call.1} parent=1 // pred_check_branch
      %13 = sbr.rel (0) target = $region5
    $region4: #{tpu_custom_call.1} parent=1 // pred_region
      _
    $region5: #{tpu_custom_call.1} parent=1 // pred_fallthru
      _
    // Predicated region
    $region6: #{tpu_custom_call.1} parent=1 // pred_check
      _
    $region7: #{tpu_custom_call.1} parent=1 // pred_check_branch
      %15 = sbr.rel (0) target = $region9
    $region8: #{tpu_custom_call.1} parent=1 // pred_region
      _
    $region9: #{tpu_custom_call.1} parent=1 // pred_fallthru
      _
    // Predicated region
    $region10: #{tpu_custom_call.1} parent=1 // pred_check
      _
    $region11: #{tpu_custom_call.1} parent=1 // pred_check_branch
      %17 = sbr.rel (0) target = $region13
    $region12: #{tpu_custom_call.1} parent=1 // pred_region
      %s19 = ssub.s32 256, 256
      %20 = vsyncadd [#allocation5], %s19
      %s21 = sshll.u32 [#allocation4], 4
      %s22 = int_to_ptr.vmem [resolvable:$true] %s21
      %27 = dma.hbm_to_vmem [thread:$0]  %s2, 256, %s22, [#allocation5], 128, 128, 8
    $region13: #{tpu_custom_call.1} parent=1 // pred_fallthru
      _
    // Predicated region
    $region14: #{tpu_custom_call.1} parent=1 // pred_check
      _
    $region15: #{tpu_custom_call.1} parent=1 // pred_check_branch
      %29 = sbr.rel (0) target = $region17
    $region16: #{tpu_custom_call.1} parent=1 // pred_region
      %30 = dma.done [#allocation5], 256
    $region17: #{tpu_custom_call.1} parent=1 // pred_fallthru
      _
    %v31 = vld [vmem:[#allocation4] sm:$0xff]
    %v32 = vld [vmem:[#allocation4 + $0x8] sm:$0xff]
    %vm33 = vcmask 261120
    %v34 = vsel %vm33, %v31, 0.0
    %35 = vadd.xlane.f32.xlu0 %v34
    %v36 = vpop.xlane.xlu0 %35
    %v37 = vsel %vm33, %v32, 0.0
    %38 = vadd.xlane.f32.xlu0 %v37
    %v39 = vpop.xlane.xlu0 %38
    %v40 = vrcp.pop 32.0
    %v41 = vmul.f32 %v36, %v40
    %v42 = vmul.f32 %v39, %v40
    %v43 = vsub.f32 %v31, %v41
    %v44 = vsub.f32 %v32, %v42
    %v45 = vmul.f32 %v43, %v43
    %v46 = vmul.f32 %v44, %v44
    %v47 = vsel %vm33, %v45, 0.0
    %48 = vadd.xlane.f32.xlu0 %v47
    %v49 = vpop.xlane.xlu0 %48
    %v50 = vsel %vm33, %v46, 0.0
    %51 = vadd.xlane.f32.xlu0 %v50
    %v52 = vpop.xlane.xlu0 %51
    %v53 = vmul.f32 %v49, 0.032258064
    %v54 = vmul.f32 %v52, 0.032258064
    %v55 = vrsqrt.pop %v53
    %v56 = vmul.f32 %v53, %v55
    %vm57 = vcmp.eq.f32.partialorder %v53, inf
    %v58 = vsel %vm57, %v53, %v56
    %vm59 = vcmp.eq.f32.partialorder %v53, 0.0
    %v60 = vand.u32 %v53, 2147483648
    %v61 = vsel %vm59, %v60, %v58
    %v62 = vrsqrt.pop %v54
    %v63 = vmul.f32 %v54, %v62
    %vm64 = vcmp.eq.f32.partialorder %v54, inf
    %v65 = vsel %vm64, %v54, %v63
    %vm66 = vcmp.eq.f32.partialorder %v54, 0.0
    %v67 = vand.u32 %v54, 2147483648
    %v68 = vsel %vm66, %v67, %v65
    %v69 = vadd.f32 %v61, 1e-06
    %v70 = vadd.f32 %v68, 1e-06
    %v71 = vrcp.pop %v69
    %v72 = vmul.f32 1.0, %v71
    %v73 = vrcp.pop %v70
    %v74 = vmul.f32 1.0, %v73
    %s75 = sld [smem:[#allocation2]]
    %s76 = sld [smem:[#allocation3]]
    %v77 = vstv %s75
    %v78 = vmul.f32 %v77, %v72
    %v79 = vmul.f32 %v77, %v74
    %v80 = vmul.f32 %v43, %v78
    %v81 = vmul.f32 %v44, %v79
    %v82 = vstv %s76
    %v83 = vadd.f32 %v80, %v82
    %v84 = vadd.f32 %v81, %v82
    %85 = vst.msk [vmem:[#allocation7] sm:$0xff] %vm33, %v83
    %86 = vst.msk [vmem:[#allocation7 + $0x8] sm:$0xff] %vm33, %v84
    // Predicated region
    $region18: #{tpu_custom_call.1} parent=1 // pred_check
      _
    $region19: #{tpu_custom_call.1} parent=1 // pred_check_branch
      %88 = sbr.rel (0) target = $region21
    $region20: #{tpu_custom_call.1} parent=1 // pred_region
      %s90 = ssub.s32 256, 256
      %91 = vsyncadd [#allocation6], %s90
      %s92 = sshll.u32 [#allocation7], 4
      %s93 = int_to_ptr.vmem [resolvable:$true] %s92
      %98 = dma.vmem_to_hbm [thread:$0]  %s93, 256, %s3, [#allocation6], 128, 128, 8
    $region21: #{tpu_custom_call.1} parent=1 // pred_fallthru
      _
    // Predicated region
    $region22: #{tpu_custom_call.1} parent=1 // pred_check
      _
    $region23: #{tpu_custom_call.1} parent=1 // pred_check_branch
      %100 = sbr.rel (0) target = $region25
    $region24: #{tpu_custom_call.1} parent=1 // pred_region
      %101 = dma.done [#allocation6], 256
    $region25: #{tpu_custom_call.1} parent=1 // pred_fallthru
      _
    %102 = vsyncpa [#allocation5], 1
    %103 = vsyncpa [#allocation6], 1

</llo_original>
